<compile_context>
chip_gen: v6e
topology: v6e:2x2x1
jax: 0.10.0
libtpu: 0.0.40
codegen_flags: <defaults>
</compile_context>

<pallas_src>
import jax
import jax.numpy as jnp
from jax import lax
from jax.experimental import pallas as pl
from jax.experimental.pallas import tpu as pltpu

# Contract x's last dim against W's dim 1 => x @ W.T with W in (out, in) layout.
_CONTRACT_LAST = (((1,), (1,)), ((), ()))


def _a2_kernel(x_ref, w2_ref, b2_ref, w1_ref, b1_ref, o_ref):
    # Fused A2 forward: y = Linear_c1(Linear_c2(x))
    x = x_ref[...]
    h = lax.dot_general(x, w2_ref[...], _CONTRACT_LAST,
                        preferred_element_type=jnp.float32) + b2_ref[...]
    y = lax.dot_general(h, w1_ref[...], _CONTRACT_LAST,
                        preferred_element_type=jnp.float32) + b1_ref[...]
    o_ref[...] = y  # TODO(synk): output last dim = 10 -> masked lane stores; lane-dense
    #                 packing only possible if the model's feature width changes.


def a2_forward(x, w1, b1, w2, b2, *, tile_b=512):
    """x: (B, 10); w1/w2: (10, 10) in PyTorch (out, in) layout; b1/b2: (10,)."""
    B, in_f = x.shape
    out_f = w1.shape[0]

    # Row-tiled grid: full-problem block when small, 512-row tiles when large
    # (rows are independent, so padding the batch to a full tile is safe).
    tb = B if B <= tile_b else tile_b
    Bp = pl.cdiv(B, tb) * tb
    if Bp != B:
        x = jnp.pad(x, ((0, Bp - B), (0, 0)))
    grid = (Bp // tb,)

    # Keep refs 2-D for TPU layout; reshape is free (no data movement).
    b1_2d = b1.reshape(1, out_f)
    b2_2d = b2.reshape(1, out_f)

    flops = 2 * (2 * Bp * in_f * out_f)  # two (Bp x in_f x out_f) matmuls
    bytes_accessed = 4 * (Bp * in_f + 2 * in_f * out_f + 2 * out_f + Bp * out_f)

    out = pl.pallas_call(
        _a2_kernel,
        out_shape=jax.ShapeDtypeStruct((Bp, out_f), jnp.float32),
        grid=grid,
        in_specs=[
            pl.BlockSpec((tb, in_f), lambda i: (i, 0)),        # x tile
            pl.BlockSpec((out_f, in_f), lambda i: (0, 0)),     # c2.weight (replicated)
            pl.BlockSpec((1, out_f), lambda i: (0, 0)),        # c2.bias
            pl.BlockSpec((out_f, in_f), lambda i: (0, 0)),     # c1.weight (replicated)
            pl.BlockSpec((1, out_f), lambda i: (0, 0)),        # c1.bias
        ],
        out_specs=pl.BlockSpec((tb, out_f), lambda i: (i, 0)),
        compiler_params=pltpu.CompilerParams(
            dimension_semantics=("parallel",)),
        cost_estimate=pl.CostEstimate(
            flops=flops, transcendentals=0, bytes_accessed=bytes_accessed),
    )(x, w2, b2_2d, w1, b1_2d)

    return out[:B] if Bp != B else out


if __name__ == "__main__":
    key = jax.random.PRNGKey(0)
    kx, kw1, kb1, kw2, kb2 = jax.random.split(key, 5)

    B, F = 8, 10
    x = jax.random.normal(kx, (B, F), dtype=jnp.float32)

    # Deterministic params mimicking nn.Linear(10, 10) default init:
    # U(-1/sqrt(in_features), 1/sqrt(in_features)), weights in (out, in) layout.
    bound = 1.0 / jnp.sqrt(jnp.float32(F))
    w1 = jax.random.uniform(kw1, (F, F), minval=-bound, maxval=bound, dtype=jnp.float32)
    b1 = jax.random.uniform(kb1, (F,), minval=-bound, maxval=bound, dtype=jnp.float32)
    w2 = jax.random.uniform(kw2, (F, F), minval=-bound, maxval=bound, dtype=jnp.float32)
    b2 = jax.random.uniform(kb2, (F,), minval=-bound, maxval=bound, dtype=jnp.float32)

    out = a2_forward(x, w1, b1, w2, b2)
    out = jax.block_until_ready(out)

    # Reference in plain JAX: y = c1(c2(x))
    ref = (x @ w2.T + b2) @ w1.T + b1
    assert out.shape == (B, F)
    assert jnp.allclose(out, ref, atol=1e-5, rtol=1e-5)

    print("KERNEL_OK")
</pallas_src>

<mosaic_0001>
module attributes {stable_mosaic.version = 11 : i64} {
  func.func @_a2_kernel(%arg0: i32, %arg1: memref<8x10xf32, #tpu.memory_space<vmem>>, %arg2: memref<10x10xf32, #tpu.memory_space<vmem>>, %arg3: memref<1x10xf32, #tpu.memory_space<vmem>>, %arg4: memref<10x10xf32, #tpu.memory_space<vmem>>, %arg5: memref<1x10xf32, #tpu.memory_space<vmem>>, %arg6: memref<8x10xf32, #tpu.memory_space<vmem>>) attributes {dimension_semantics = [#tpu.dimension_semantics<parallel>], iteration_bounds = array<i64: 1>, scalar_prefetch = 0 : i64, scratch_operands = 0 : i64, tpu.core_type = #tpu.core_type<tc>, window_params = [{transform_indices = @transform_0, window_bounds = array<i64: 8, 10>}, {pipeline_mode = #tpu.pipeline_mode<synchronous>, transform_indices = @transform_1, window_bounds = array<i64: 10, 10>}, {pipeline_mode = #tpu.pipeline_mode<synchronous>, transform_indices = @transform_2, window_bounds = array<i64: 1, 10>}, {pipeline_mode = #tpu.pipeline_mode<synchronous>, transform_indices = @transform_3, window_bounds = array<i64: 10, 10>}, {pipeline_mode = #tpu.pipeline_mode<synchronous>, transform_indices = @transform_4, window_bounds = array<i64: 1, 10>}, {transform_indices = @transform_5, window_bounds = array<i64: 8, 10>}]} {
    %c0 = arith.constant 0 : index
    %c0_0 = arith.constant 0 : index
    %0 = vector.load %arg1[%c0, %c0_0] : memref<8x10xf32, #tpu.memory_space<vmem>>, vector<8x10xf32>
    %c0_1 = arith.constant 0 : index
    %c0_2 = arith.constant 0 : index
    %1 = vector.load %arg2[%c0_1, %c0_2] : memref<10x10xf32, #tpu.memory_space<vmem>>, vector<10x10xf32>
    %cst = arith.constant dense<0.000000e+00> : vector<8x10xf32>
    %2 = tpu.matmul %0, %1, %cst {dimension_numbers = #tpu.dot_dimension_numbers<[1], [1], [0], [0], [0, 0, 1, 0], [], []>} : vector<8x10xf32>, vector<10x10xf32>, vector<8x10xf32> -> vector<8x10xf32>
    %c0_3 = arith.constant 0 : index
    %c0_4 = arith.constant 0 : index
    %3 = vector.load %arg3[%c0_3, %c0_4] : memref<1x10xf32, #tpu.memory_space<vmem>>, vector<1x10xf32>
    %4 = vector.broadcast %3 : vector<1x10xf32> to vector<8x10xf32>
    %5 = arith.addf %2, %4 : vector<8x10xf32>
    %c0_5 = arith.constant 0 : index
    %c0_6 = arith.constant 0 : index
    %6 = vector.load %arg4[%c0_5, %c0_6] : memref<10x10xf32, #tpu.memory_space<vmem>>, vector<10x10xf32>
    %cst_7 = arith.constant dense<0.000000e+00> : vector<8x10xf32>
    %7 = tpu.matmul %5, %6, %cst_7 {dimension_numbers = #tpu.dot_dimension_numbers<[1], [1], [0], [0], [0, 0, 1, 0], [], []>} : vector<8x10xf32>, vector<10x10xf32>, vector<8x10xf32> -> vector<8x10xf32>
    %c0_8 = arith.constant 0 : index
    %c0_9 = arith.constant 0 : index
    %8 = vector.load %arg5[%c0_8, %c0_9] : memref<1x10xf32, #tpu.memory_space<vmem>>, vector<1x10xf32>
    %9 = vector.broadcast %8 : vector<1x10xf32> to vector<8x10xf32>
    %10 = arith.addf %7, %9 : vector<8x10xf32>
    %c0_10 = arith.constant 0 : index
    %c0_11 = arith.constant 0 : index
    %11 = vector.load %arg6[%c0_10, %c0_11] : memref<8x10xf32, #tpu.memory_space<vmem>>, vector<8x10xf32>
    tpu.vector_store %arg6[%c0_10, %c0_11], %10 {strides = array<i32>} : memref<8x10xf32, #tpu.memory_space<vmem>>, vector<8x10xf32>,
    return
  }
  func.func @transform_0(%arg0: i32) -> (i32, i32) {
    %c0_i32 = arith.constant 0 : i32
    %c0_i32_0 = arith.constant 0 : i32
    return %arg0, %c0_i32 : i32, i32
  }
  func.func @transform_1(%arg0: i32) -> (i32, i32) {
    %c0_i32 = arith.constant 0 : i32
    %c0_i32_0 = arith.constant 0 : i32
    %c0_i32_1 = arith.constant 0 : i32
    return %c0_i32, %c0_i32_0 : i32, i32
  }
  func.func @transform_2(%arg0: i32) -> (i32, i32) {
    %c0_i32 = arith.constant 0 : i32
    %c0_i32_0 = arith.constant 0 : i32
    %c0_i32_1 = arith.constant 0 : i32
    return %c0_i32, %c0_i32_0 : i32, i32
  }
  func.func @transform_3(%arg0: i32) -> (i32, i32) {
    %c0_i32 = arith.constant 0 : i32
    %c0_i32_0 = arith.constant 0 : i32
    %c0_i32_1 = arith.constant 0 : i32
    return %c0_i32, %c0_i32_0 : i32, i32
  }
  func.func @transform_4(%arg0: i32) -> (i32, i32) {
    %c0_i32 = arith.constant 0 : i32
    %c0_i32_0 = arith.constant 0 : i32
    %c0_i32_1 = arith.constant 0 : i32
    return %c0_i32, %c0_i32_0 : i32, i32
  }
  func.func @transform_5(%arg0: i32) -> (i32, i32) {
    %c0_i32 = arith.constant 0 : i32
    %c0_i32_0 = arith.constant 0 : i32
    return %arg0, %c0_i32 : i32, i32
  }
}

</mosaic_0001>

<llo_original>
// kernel: tpu_custom_call.1
$region0: #{tpu_custom_call.1}
  #allocation0 [shape = 'u32[]', space=smem, size = 0x4, offset = 0x4, fixed_abs, tag = 'smem constant byte address 0x4 - core index']
  #allocation1 [shape = 'u32[144,128]{1,0:T(1,128)}', space=vmem, size = 0x12000, scoped, tag = 'internal scratch']
  %s0 = inlined_call_operand.hbm [shape: f32[8,10], index: 0, kind: input, shape index: {}]
  %s1 = inlined_call_operand.hbm [shape: f32[10,10], index: 1, kind: input, shape index: {}]
  %s2 = inlined_call_operand.vmem [shape: f32[1,10], index: 2, kind: input, shape index: {}]
  %s3 = inlined_call_operand.hbm [shape: f32[10,10], index: 3, kind: input, shape index: {}]
  %s4 = inlined_call_operand.vmem [shape: f32[1,10], index: 4, kind: input, shape index: {}]
  %s5 = inlined_call_operand.hbm [shape: f32[8,10], index: 5, kind: output, shape index: {}]
  %s6 = sld [smem:[#allocation0]]
  $region42: #{tpu_custom_call.1} parent=0
    _
  %s8 = ssub.s32 1, %s6
  %s9 = scalar_select 0, %s8, %s6
  $region1: #{tpu_custom_call.1} parent=0
    #allocation2 [shape = 'u8[4096]{0}', space=vmem, size = 0x1000, scoped, tag = 'input window, operand 0, single buffered']
    #allocation3 [shape = 's32[1]{0}', space=sflag, size = 0x4, scoped, tag = 'scoped memory for tpu_custom_call.1']
    #allocation4 [shape = 's32[1]{0}', space=sflag, size = 0x4, scoped, tag = 'scoped memory for tpu_custom_call.1']
    #allocation5 [shape = 'u8[8192]{0}', space=vmem, size = 0x2000, scoped, tag = 'input window, operand 1, single buffered']
    #allocation6 [shape = 's32[1]{0}', space=sflag, size = 0x4, scoped, tag = 'scoped memory for tpu_custom_call.1']
    #allocation7 [shape = 'u8[8192]{0}', space=vmem, size = 0x2000, scoped, tag = 'input window, operand 3, single buffered']
    #allocation8 [shape = 'u8[4096]{0}', space=vmem, size = 0x1000, scoped, tag = 'output window, operand 0, single buffered']
    %10 = vsyncpa [#allocation3], 0
    %11 = vsyncpa [#allocation6], 0
    %12 = vsyncpa [#allocation4], 0
    // Predicated region
    $region2: #{tpu_custom_call.1} parent=1 // pred_check
      _
    $region3: #{tpu_custom_call.1} parent=1 // pred_check_branch
      %14 = sbr.rel (0) target = $region5
    $region4: #{tpu_custom_call.1} parent=1 // pred_region
      %s16 = ssub.s32 128, 128
      %17 = vsyncadd [#allocation3], %s16
      %s19 = sshll.u32 [#allocation2], 4
      %s20 = int_to_ptr.vmem [resolvable:$true] %s19
      %22 = dma.hbm_to_vmem [thread:$0]  %s0, 128, %s20, [#allocation3]
    $region5: #{tpu_custom_call.1} parent=1 // pred_fallthru
      _
    // Predicated region
    $region6: #{tpu_custom_call.1} parent=1 // pred_check
      _
    $region7: #{tpu_custom_call.1} parent=1 // pred_check_branch
      %24 = sbr.rel (0) target = $region9
    $region8: #{tpu_custom_call.1} parent=1 // pred_region
      %s26 = ssub.s32 256, 256
      %27 = vsyncadd [#allocation6], %s26
      %s28 = sshll.u32 [#allocation5], 4
      %s29 = int_to_ptr.vmem [resolvable:$true] %s28
      %34 = dma.hbm_to_vmem [thread:$0]  %s1, 256, %s29, [#allocation6], 128, 128, 8
    $region9: #{tpu_custom_call.1} parent=1 // pred_fallthru
      _
    // Predicated region
    $region10: #{tpu_custom_call.1} parent=1 // pred_check
      _
    $region11: #{tpu_custom_call.1} parent=1 // pred_check_branch
      %36 = sbr.rel (0) target = $region13
    $region12: #{tpu_custom_call.1} parent=1 // pred_region
      _
    $region13: #{tpu_custom_call.1} parent=1 // pred_fallthru
      _
    // Predicated region
    $region14: #{tpu_custom_call.1} parent=1 // pred_check
      _
    $region15: #{tpu_custom_call.1} parent=1 // pred_check_branch
      %38 = sbr.rel (0) target = $region17
    $region16: #{tpu_custom_call.1} parent=1 // pred_region
      %s40 = ssub.s32 256, 256
      %41 = vsyncadd [#allocation6], %s40
      %s42 = sshll.u32 [#allocation7], 4
      %s43 = int_to_ptr.vmem [resolvable:$true] %s42
      %48 = dma.hbm_to_vmem [thread:$0]  %s3, 256, %s43, [#allocation6], 128, 128, 8
    $region17: #{tpu_custom_call.1} parent=1 // pred_fallthru
      _
    // Predicated region
    $region18: #{tpu_custom_call.1} parent=1 // pred_check
      _
    $region19: #{tpu_custom_call.1} parent=1 // pred_check_branch
      %50 = sbr.rel (0) target = $region21
    $region20: #{tpu_custom_call.1} parent=1 // pred_region
      _
    $region21: #{tpu_custom_call.1} parent=1 // pred_fallthru
      _
    // Predicated region
    $region22: #{tpu_custom_call.1} parent=1 // pred_check
      _
    $region23: #{tpu_custom_call.1} parent=1 // pred_check_branch
      %52 = sbr.rel (0) target = $region25
    $region24: #{tpu_custom_call.1} parent=1 // pred_region
      %53 = dma.done [#allocation3], 128
    $region25: #{tpu_custom_call.1} parent=1 // pred_fallthru
      _
    // Predicated region
    $region26: #{tpu_custom_call.1} parent=1 // pred_check
      _
    $region27: #{tpu_custom_call.1} parent=1 // pred_check_branch
      %55 = sbr.rel (0) target = $region29
    $region28: #{tpu_custom_call.1} parent=1 // pred_region
      %56 = dma.done [#allocation6], 256
    $region29: #{tpu_custom_call.1} parent=1 // pred_fallthru
      _
    // Predicated region
    $region30: #{tpu_custom_call.1} parent=1 // pred_check
      _
    $region31: #{tpu_custom_call.1} parent=1 // pred_check_branch
      %58 = sbr.rel (0) target = $region33
    $region32: #{tpu_custom_call.1} parent=1 // pred_region
      %59 = dma.done [#allocation6], 256
    $region33: #{tpu_custom_call.1} parent=1 // pred_fallthru
      _
    %v60 = vld [vmem:[#allocation2] sm:$0xff]
    %v61 = vld [vmem:[#allocation5] sm:$0xff]
    %v62 = vld [vmem:[#allocation5 + $0x8] sm:$0x3]
    %v63 = vld [vmem:[%s2] sm:$0x1]
    %v65 = vlaneseq
    %v66 = vshrl.u32 %v65, 7
    %v67 = vsub.s32 0, %v66
    %v68 = vrot.slane %v63, %v67
    %vm70 = vcmask 80896
    %v72 = vsel %vm70, %v60, 0
    %v75 = vsel %vm70, %v61, 0
    %v78 = vsel %vm70, %v62, 0
    %80 = vmatprep.subr.mxu0 0.0
    %81 = vmatpush1.xpose.msra.mxu0 0.0
    %82 = vmatprep.subr.mxu0 0.0
    %83 = vmatpush1.xpose.msra.mxu0 0.0
    %84 = vmatprep.subr.mxu0 0.0
    %85 = vmatpush1.xpose.msra.mxu0 0.0
    %86 = vmatprep.subr.mxu0 0.0
    %87 = vmatpush1.xpose.msra.mxu0 0.0
    %88 = vmatprep.subr.mxu0 0.0
    %89 = vmatpush1.xpose.msra.mxu0 0.0
    %90 = vmatprep.subr.mxu0 0.0
    %91 = vmatpush1.xpose.msra.mxu0 0.0
    %92 = vmatprep.subr.mxu0 0.0
    %93 = vmatpush1.xpose.msra.mxu0 0.0
    %94 = vmatprep.subr.mxu0 0.0
    %95 = vmatpush1.xpose.msra.mxu0 0.0
    %96 = vmatprep.subr.mxu0 0.0
    %97 = vmatpush1.xpose.msra.mxu0 0.0
    %98 = vmatprep.subr.mxu0 0.0
    %99 = vmatpush1.xpose.msra.mxu0 0.0
    %100 = vmatprep.subr.mxu0 0.0
    %101 = vmatpush1.xpose.msra.mxu0 0.0
    %102 = vmatprep.subr.mxu0 0.0
    %103 = vmatpush1.xpose.msra.mxu0 0.0
    %104 = vmatprep.subr.mxu0 0.0
    %105 = vmatpush1.xpose.msra.mxu0 0.0
    %106 = vmatprep.subr.mxu0 0.0
    %107 = vmatpush1.xpose.msra.mxu0 0.0
    %108 = vmatprep.subr.mxu0 0.0
    %109 = vmatpush1.xpose.msra.mxu0 %v78
    %110 = vmatprep.subr.mxu0 0.0
    %111 = vmatpush1.xpose.msra.mxu0 %v75
    %112 = vmatprep.subr.mxu0 0.0
    %113 = vmatpush2.xpose.msra.mxu0 0.0
    %114 = vmatprep.subr.mxu0 0.0
    %115 = vmatpush2.xpose.msra.mxu0 0.0
    %116 = vmatprep.subr.mxu0 0.0
    %117 = vmatpush2.xpose.msra.mxu0 0.0
    %118 = vmatprep.subr.mxu0 0.0
    %119 = vmatpush2.xpose.msra.mxu0 0.0
    %120 = vmatprep.subr.mxu0 0.0
    %121 = vmatpush2.xpose.msra.mxu0 0.0
    %122 = vmatprep.subr.mxu0 0.0
    %123 = vmatpush2.xpose.msra.mxu0 0.0
    %124 = vmatprep.subr.mxu0 0.0
    %125 = vmatpush2.xpose.msra.mxu0 0.0
    %126 = vmatprep.subr.mxu0 0.0
    %127 = vmatpush2.xpose.msra.mxu0 0.0
    %128 = vmatprep.subr.mxu0 0.0
    %129 = vmatpush2.xpose.msra.mxu0 0.0
    %130 = vmatprep.subr.mxu0 0.0
    %131 = vmatpush2.xpose.msra.mxu0 0.0
    %132 = vmatprep.subr.mxu0 0.0
    %133 = vmatpush2.xpose.msra.mxu0 0.0
    %134 = vmatprep.subr.mxu0 0.0
    %135 = vmatpush2.xpose.msra.mxu0 0.0
    %136 = vmatprep.subr.mxu0 0.0
    %137 = vmatpush2.xpose.msra.mxu0 0.0
    %138 = vmatprep.subr.mxu0 0.0
    %139 = vmatpush2.xpose.msra.mxu0 0.0
    %140 = vmatprep.subr.mxu0 0.0
    %141 = vmatpush2.xpose.msra.mxu0 0.0
    %142 = vmatprep.subr.mxu0 0.0
    %143 = vmatpush2.xpose.msra.mxu0 0.0
    %144 = vmatprep.mubr.f32.mxu0 0.0
    %145 = vmatmul.mubr.f32.gmra.mxu0 %v72
    %v146 = vpop.f32.mrf.mxu0
    %v147 = vadd.f32 %v68, %v146
    %v148 = vpop.f32.mrf.mxu0
    %149 = vdwg.mxu0
    %v150 = vld [vmem:[#allocation7] sm:$0xff]
    %v151 = vld [vmem:[#allocation7 + $0x8] sm:$0x3]
    %v152 = vld [vmem:[%s4] sm:$0x1]
    %v154 = vlaneseq
    %v155 = vshrl.u32 %v154, 7
    %v156 = vsub.s32 0, %v155
    %v157 = vrot.slane %v152, %v156
    %v160 = vsel %vm70, %v147, 0
    %v163 = vsel %vm70, %v150, 0
    %v166 = vsel %vm70, %v151, 0
    %168 = vmatprep.subr.mxu0 0.0
    %169 = vmatpush1.xpose.msra.mxu0 0.0
    %170 = vmatprep.subr.mxu0 0.0
    %171 = vmatpush1.xpose.msra.mxu0 0.0
    %172 = vmatprep.subr.mxu0 0.0
    %173 = vmatpush1.xpose.msra.mxu0 0.0
    %174 = vmatprep.subr.mxu0 0.0
    %175 = vmatpush1.xpose.msra.mxu0 0.0
    %176 = vmatprep.subr.mxu0 0.0
    %177 = vmatpush1.xpose.msra.mxu0 0.0
    %178 = vmatprep.subr.mxu0 0.0
    %179 = vmatpush1.xpose.msra.mxu0 0.0
    %180 = vmatprep.subr.mxu0 0.0
    %181 = vmatpush1.xpose.msra.mxu0 0.0
    %182 = vmatprep.subr.mxu0 0.0
    %183 = vmatpush1.xpose.msra.mxu0 0.0
    %184 = vmatprep.subr.mxu0 0.0
    %185 = vmatpush1.xpose.msra.mxu0 0.0
    %186 = vmatprep.subr.mxu0 0.0
    %187 = vmatpush1.xpose.msra.mxu0 0.0
    %188 = vmatprep.subr.mxu0 0.0
    %189 = vmatpush1.xpose.msra.mxu0 0.0
    %190 = vmatprep.subr.mxu0 0.0
    %191 = vmatpush1.xpose.msra.mxu0 0.0
    %192 = vmatprep.subr.mxu0 0.0
    %193 = vmatpush1.xpose.msra.mxu0 0.0
    %194 = vmatprep.subr.mxu0 0.0
    %195 = vmatpush1.xpose.msra.mxu0 0.0
    %196 = vmatprep.subr.mxu0 0.0
    %197 = vmatpush1.xpose.msra.mxu0 %v166
    %198 = vmatprep.subr.mxu0 0.0
    %199 = vmatpush1.xpose.msra.mxu0 %v163
    %200 = vmatprep.subr.mxu0 0.0
    %201 = vmatpush2.xpose.msra.mxu0 0.0
    %202 = vmatprep.subr.mxu0 0.0
    %203 = vmatpush2.xpose.msra.mxu0 0.0
    %204 = vmatprep.subr.mxu0 0.0
    %205 = vmatpush2.xpose.msra.mxu0 0.0
    %206 = vmatprep.subr.mxu0 0.0
    %207 = vmatpush2.xpose.msra.mxu0 0.0
    %208 = vmatprep.subr.mxu0 0.0
    %209 = vmatpush2.xpose.msra.mxu0 0.0
    %210 = vmatprep.subr.mxu0 0.0
    %211 = vmatpush2.xpose.msra.mxu0 0.0
    %212 = vmatprep.subr.mxu0 0.0
    %213 = vmatpush2.xpose.msra.mxu0 0.0
    %214 = vmatprep.subr.mxu0 0.0
    %215 = vmatpush2.xpose.msra.mxu0 0.0
    %216 = vmatprep.subr.mxu0 0.0
    %217 = vmatpush2.xpose.msra.mxu0 0.0
    %218 = vmatprep.subr.mxu0 0.0
    %219 = vmatpush2.xpose.msra.mxu0 0.0
    %220 = vmatprep.subr.mxu0 0.0
    %221 = vmatpush2.xpose.msra.mxu0 0.0
    %222 = vmatprep.subr.mxu0 0.0
    %223 = vmatpush2.xpose.msra.mxu0 0.0
    %224 = vmatprep.subr.mxu0 0.0
    %225 = vmatpush2.xpose.msra.mxu0 0.0
    %226 = vmatprep.subr.mxu0 0.0
    %227 = vmatpush2.xpose.msra.mxu0 0.0
    %228 = vmatprep.subr.mxu0 0.0
    %229 = vmatpush2.xpose.msra.mxu0 0.0
    %230 = vmatprep.subr.mxu0 0.0
    %231 = vmatpush2.xpose.msra.mxu0 0.0
    %232 = vmatprep.mubr.f32.mxu0 0.0
    %233 = vmatmul.mubr.f32.gmra.mxu0 %v160
    %v234 = vpop.f32.mrf.mxu0
    %v235 = vadd.f32 %v157, %v234
    %v236 = vpop.f32.mrf.mxu0
    %237 = vdwg.mxu0
    %238 = vst.msk [vmem:[#allocation8] sm:$0xff] %vm70, %v235
    // Predicated region
    $region34: #{tpu_custom_call.1} parent=1 // pred_check
      _
    $region35: #{tpu_custom_call.1} parent=1 // pred_check_branch
      %240 = sbr.rel (0) target = $region37
    $region36: #{tpu_custom_call.1} parent=1 // pred_region
      %s242 = ssub.s32 128, 128
      %243 = vsyncadd [#allocation4], %s242
      %s245 = sshll.u32 [#allocation8], 4
      %s246 = int_to_ptr.vmem [resolvable:$true] %s245
      %248 = dma.vmem_to_hbm [thread:$0]  %s246, 128, %s5, [#allocation4]
    $region37: #{tpu_custom_call.1} parent=1 // pred_fallthru
      _
    // Predicated region
    $region38: #{tpu_custom_call.1} parent=1 // pred_check
      _
    $region39: #{tpu_custom_call.1} parent=1 // pred_check_branch
      %250 = sbr.rel (0) target = $region41
    $region40: #{tpu_custom_call.1} parent=1 // pred_region
      %251 = dma.done [#allocation4], 128
    $region41: #{tpu_custom_call.1} parent=1 // pred_fallthru
      _
    %252 = vsyncpa [#allocation3], 1
    %253 = vsyncpa [#allocation6], 1
    %254 = vsyncpa [#allocation4], 1

</llo_original>
